<compile_context>
chip_gen: v7x
topology: tpu7x:2x2x1
jax: 0.10.0
libtpu: 0.0.40
codegen_flags: <defaults>
</compile_context>

<pallas_src>
import jax
import jax.numpy as jnp
from jax import lax
from jax.experimental import pallas as pl
from jax.experimental.pallas import tpu as pltpu


_SUBLANE = 8  # f32 sublane packing


def _round_up(x, m):
    return ((x + m - 1) // m) * m


def _detect_num_tensorcores():
    """Best-effort TensorCore count (v7x has 2); defaults to 1 (v5e/v6e)."""
    try:
        info = pltpu.get_tpu_info()
        for attr in ("num_cores", "num_tensorcores", "tensorcores_per_chip",
                     "core_count", "cores_per_chip"):
            v = getattr(info, attr, None)
            if isinstance(v, int) and v > 0:
                return v
    except Exception:
        pass
    return 1


# ----------------------------------------------------------------------------
# Host-side constant: per-tap boundary masks (also mask image boundaries when
# the batch is folded onto the lane axis), derived from per-image coordinates.
# ----------------------------------------------------------------------------
def _build_tap_masks(H, W, chunk_imgs):
    HW = H * W
    L = chunk_imgs * HW
    lane = jnp.arange(L, dtype=jnp.int32)
    pix = lane % HW                    # per-image pixel index
    hh = pix // W
    ww = pix % W
    rows = []
    for oh in (-1, 0, 1):
        for ow in (-1, 0, 1):
            valid = ((hh + oh) >= 0) & ((hh + oh) < H) & \
                    ((ww + ow) >= 0) & ((ww + ow) < W)
            rows.append(valid.astype(jnp.float32))
    return jnp.stack(rows, axis=0)     # (9, L)


# ----------------------------------------------------------------------------
# In-kernel conv helpers (operate on traced values inside the fused kernel)
# ----------------------------------------------------------------------------
def _make_conv_ctx(masks_val, W, L):
    """Pair each of the 9 tap shifts with its precomputed (1, L) mask row."""
    taps = []
    t = 0
    for oh in (-1, 0, 1):
        for ow in (-1, 0, 1):
            shift = oh * W + ow
            taps.append((shift, masks_val[t:t + 1, :]))   # static slice
            t += 1
    return {"L": L, "taps": taps}


def _conv3x3_apply(x, w2d, bias_col, ctx):
    """3x3 'same' conv on a (C_pad, L) activation via one im2col matmul.

    x:        (C_pad, L)          spatial (all images of the chunk) on lanes
    w2d:      (C_pad, 9*C_pad)    bf16; rows = out channel, cols = (tap, cin)
    bias_col: (C_pad, 1)          f32
    """
    L = ctx["L"]
    cols = []
    for shift, mask_row in ctx["taps"]:
        if shift == 0:
            cols.append(x)                               # center tap: always valid
        else:
            shifted = pltpu.roll(x, (-shift) % L, 1)     # XLU lane rotation
            cols.append(shifted * mask_row)              # zero out-of-image lanes
    patches = jnp.concatenate(cols, axis=0)              # (9*C_pad, L) f32
    out = lax.dot_general(w2d, patches.astype(jnp.bfloat16),
                          dimension_numbers=(((1,), (0,)), ((), ())),
                          preferred_element_type=jnp.float32)
    return out + bias_col                                # bias fused into epilogue


# ----------------------------------------------------------------------------
# Pallas-backed component modules (the "my_import" targets)
# ----------------------------------------------------------------------------
class PallasConv2d:
    def __init__(self, in_channels, out_channels, kernel_size=3, padding=1,
                 key_seed=0):
        assert kernel_size == 3 and padding == 1
        self.in_channels = in_channels
        self.out_channels = out_channels
        key = jax.random.PRNGKey(key_seed)
        kw, kb = jax.random.split(key)
        fan_in = in_channels * kernel_size * kernel_size
        bound = 1.0 / (fan_in ** 0.5)
        self.weight = jax.random.uniform(
            kw, (out_channels, in_channels, 3, 3), jnp.float32, -bound, bound)
        self.bias = jax.random.uniform(
            kb, (out_channels,), jnp.float32, -bound, bound)

    def kernel_params(self, cpad):
        # (C_pad, 9*C_pad) im2col weight matrix, channel-padded with zeros,
        # column index = (kh*3 + kw) * cpad + ci.  Stored bf16 for the MXU.
        wp = jnp.zeros((cpad, cpad, 3, 3), jnp.float32)
        wp = wp.at[:self.out_channels, :self.in_channels].set(self.weight)
        w2d = jnp.transpose(wp, (0, 2, 3, 1)).reshape(cpad, 9 * cpad)
        b = jnp.zeros((cpad, 1), jnp.float32).at[:self.out_channels, 0].set(self.bias)
        return [w2d.astype(jnp.bfloat16), b]

    def kernel_apply(self, x, params, ctx, forward_in=None):
        w2d = next(params)
        b = next(params)
        return _conv3x3_apply(x, w2d, b, ctx)


class PallasReLU:
    def kernel_params(self, cpad):
        return []

    def kernel_apply(self, x, params, ctx, forward_in=None):
        return jnp.maximum(x, 0.0)          # fused in VMEM, no HBM pass


class PallasAdd:
    """Residual add: consumes the `forward_in` skip tensors."""
    def kernel_params(self, cpad):
        return []

    def kernel_apply(self, x, params, ctx, forward_in=None):
        if forward_in:
            for v in forward_in.values():
                x = x + v
        return x


_COMPONENT_REGISTRY = {
    "Conv2d": PallasConv2d,
    "ReLU": PallasReLU,
    "Add": PallasAdd,
}


def my_import(name):
    return _COMPONENT_REGISTRY[name]


# ----------------------------------------------------------------------------
# ModelBuilder (same construction / forward semantics as the PyTorch module,
# but the per-child sequencing happens inside ONE fused Pallas kernel)
# ----------------------------------------------------------------------------
class PallasModelBuilder:
    def __init__(self, tag, children):
        self.tag = tag
        self.child_modules = children
        self.data = {}
        self.self_modules = []
        self.sequences = {}
        self._construct()
        self._jitted_forward = None

    def _construct(self):
        for child in self.child_modules:
            if "Tag" in child.keys():
                self.self_modules.append(
                    PallasModelBuilder(child["Tag"], child["Children"]))
            elif "store_out" not in child.keys() and "forward_in" not in child.keys():
                module = my_import(child["ComponentClass"])
                self.self_modules.append(module(**child["args"]))
            else:
                this_operation = {}
                self.self_modules.append(
                    my_import(child["ComponentClass"])(**child["args"]))
                if "store_out" in child.keys():
                    this_operation["store_out"] = child["store_out"]
                if "forward_in" in child.keys():
                    if not isinstance(child["forward_in"], dict):
                        child["forward_in"] = {child["forward_in"]: child["forward_in"]}
                    this_operation["forward_in"] = child["forward_in"]
                self.sequences[len(self.self_modules) - 1] = this_operation

    # ----- static analysis helpers -----
    def channel_trace(self, c_in):
        c = c_in
        cmax = c_in
        for m in self.self_modules:
            if isinstance(m, PallasModelBuilder):
                c, sub = m.channel_trace(c)
                cmax = max(cmax, sub)
            elif isinstance(m, PallasConv2d):
                cmax = max(cmax, m.in_channels, m.out_channels)
                c = m.out_channels
        return c, cmax

    def num_convs(self):
        n = 0
        for m in self.self_modules:
            if isinstance(m, PallasModelBuilder):
                n += m.num_convs()
            elif isinstance(m, PallasConv2d):
                n += 1
        return n

    def kernel_params(self, cpad):
        params = []
        for m in self.self_modules:
            params.extend(m.kernel_params(cpad))
        return params

    # ----- in-kernel sequencing: identical logic to ModelBuilder.forward -----
    def kernel_apply(self, x, params, ctx, forward_in=None):
        data = {}  # skip-connection storage (local per forward; same semantics)
        for i, module in enumerate(self.self_modules):
            if i not in self.sequences.keys():
                x = module.kernel_apply(x, params, ctx)
            else:
                operation = self.sequences[i]
                if "forward_in" in operation.keys():
                    fwd = {}
                    for key, value in operation["forward_in"].items():
                        fwd[key] = data[value]
                    x = module.kernel_apply(x, params, ctx, forward_in=fwd)
                else:
                    x = module.kernel_apply(x, params, ctx)
                if "store_out" in operation.keys():
                    data[operation["store_out"]] = x
        return x

    # ----- host side: one fused pallas_call for the whole chain -----
    def forward(self, x):
        N, C, H, W = x.shape
        HW = H * W
        c_out, c_max = self.channel_trace(C)
        cpad = max(_SUBLANE, _round_up(c_max, _SUBLANE))

        # One grid step on single-TC chips; >=2 parallel chunks on v7x.
        n_cores = _detect_num_tensorcores()
        num_chunks = n_cores if (n_cores > 1 and N % n_cores == 0) else 1
        chunk_imgs = N // num_chunks
        L = chunk_imgs * HW            # lanes per grid step
        total_L = N * HW

        # Layout once at entry: NCHW -> (C_pad, N*HW), batch folded on lanes.
        x_l = jnp.transpose(jnp.reshape(x.astype(jnp.float32), (N, C, HW)),
                            (1, 0, 2)).reshape(C, total_L)
        if cpad > C:
            x_l = jnp.pad(x_l, ((0, cpad - C), (0, 0)))

        masks = _build_tap_masks(H, W, chunk_imgs)        # (9, L) f32, host const
        flat_params = self.kernel_params(cpad)
        n_params = len(flat_params)

        def fused_kernel(*refs):
            x_ref, m_ref = refs[0], refs[1]
            param_refs = refs[2:2 + n_params]
            o_ref = refs[2 + n_params]
            ctx = _make_conv_ctx(m_ref[...], W, L)
            param_vals = iter([r[...] for r in param_refs])
            out = self.kernel_apply(x_ref[...], param_vals, ctx)
            o_ref[...] = out.astype(o_ref.dtype)

        in_specs = [
            pl.BlockSpec((cpad, L), lambda g: (0, g)),    # activation chunk
            pl.BlockSpec((9, L), lambda g: (0, 0)),       # precomputed tap masks
        ]
        for p in flat_params:
            in_specs.append(
                pl.BlockSpec(p.shape, lambda g, _nd=p.ndim: (0,) * _nd))

        flops = 2 * self.num_convs() * total_L * (9 * cpad) * cpad
        bytes_accessed = int(
            4 * x_l.size + 4 * cpad * total_L + 4 * masks.size
            + sum(int(p.size) * p.dtype.itemsize for p in flat_params))

        out_l = pl.pallas_call(
            fused_kernel,
            out_shape=jax.ShapeDtypeStruct((cpad, total_L), jnp.float32),
            grid=(num_chunks,),
            in_specs=in_specs,
            out_specs=pl.BlockSpec((cpad, L), lambda g: (0, g)),
            compiler_params=pltpu.CompilerParams(
                dimension_semantics=("parallel",)),
            cost_estimate=pl.CostEstimate(
                flops=flops, transcendentals=0, bytes_accessed=bytes_accessed),
        )(x_l, masks, *flat_params)

        # Layout once at exit: (C_pad, N*HW) -> NCHW with real channel count.
        out = out_l[:c_out, :].reshape(c_out, N, HW).transpose(1, 0, 2)
        return out.reshape(N, c_out, H, W).astype(x.dtype)

    def __call__(self, x):
        if self._jitted_forward is None:
            self._jitted_forward = jax.jit(self.forward)
        return self._jitted_forward(x)


# ----------------------------------------------------------------------------
# Plain-JAX reference (for correctness check only)
# ----------------------------------------------------------------------------
def _ref_conv(x, conv):
    out = lax.conv_general_dilated(
        x, conv.weight, window_strides=(1, 1), padding="SAME",
        dimension_numbers=("NCHW", "OIHW", "NCHW"))
    return out + conv.bias[None, :, None, None]


def _reference_forward(model, x):
    m = model.self_modules
    h = jnp.maximum(_ref_conv(x, m[0]), 0.0)
    skip = h
    h = jnp.maximum(_ref_conv(h, m[2]), 0.0)
    h = h + skip
    return _ref_conv(h, m[5])


# ----------------------------------------------------------------------------
if __name__ == "__main__":
    children = [
        {"ComponentClass": "Conv2d",
         "args": {"in_channels": 4, "out_channels": 8, "kernel_size": 3,
                  "padding": 1, "key_seed": 1}},
        {"ComponentClass": "ReLU", "args": {}, "store_out": "skip"},
        {"ComponentClass": "Conv2d",
         "args": {"in_channels": 8, "out_channels": 8, "kernel_size": 3,
                  "padding": 1, "key_seed": 2}},
        {"ComponentClass": "ReLU", "args": {}},
        {"ComponentClass": "Add", "args": {}, "forward_in": "skip"},
        {"ComponentClass": "Conv2d",
         "args": {"in_channels": 8, "out_channels": 4, "kernel_size": 3,
                  "padding": 1, "key_seed": 3}},
    ]

    model = PallasModelBuilder("root", children)

    x = jax.random.normal(jax.random.PRNGKey(0), (2, 4, 16, 16), jnp.float32)

    out = jax.block_until_ready(model(x))

    ref = _reference_forward(model, x)
    assert out.shape == (2, 4, 16, 16), out.shape
    # bf16 MXU operands with f32 accumulation (per perf review) -> tolerance
    # reflects bf16 operand rounding across the three chained convolutions.
    assert jnp.allclose(out, ref, atol=5e-2, rtol=5e-2), "mismatch vs reference"

    print("KERNEL_OK")
</pallas_src>

<mosaic_0001>
module attributes {stable_mosaic.version = 11 : i64} {
  func.func @fused_kernel(%arg0: i32, %arg1: memref<8x512xf32, #tpu.memory_space<vmem>>, %arg2: memref<9x512xf32, #tpu.memory_space<vmem>>, %arg3: memref<8x72xbf16, #tpu.memory_space<vmem>>, %arg4: memref<8x1xf32, #tpu.memory_space<vmem>>, %arg5: memref<8x72xbf16, #tpu.memory_space<vmem>>, %arg6: memref<8x1xf32, #tpu.memory_space<vmem>>, %arg7: memref<8x72xbf16, #tpu.memory_space<vmem>>, %arg8: memref<8x1xf32, #tpu.memory_space<vmem>>, %arg9: memref<8x512xf32, #tpu.memory_space<vmem>>) attributes {dimension_semantics = [#tpu.dimension_semantics<parallel>], iteration_bounds = array<i64: 1>, scalar_prefetch = 0 : i64, scratch_operands = 0 : i64, tpu.core_type = #tpu.core_type<tc>, window_params = [{transform_indices = @transform_0, window_bounds = array<i64: 8, 512>}, {pipeline_mode = #tpu.pipeline_mode<synchronous>, transform_indices = @transform_1, window_bounds = array<i64: 9, 512>}, {pipeline_mode = #tpu.pipeline_mode<synchronous>, transform_indices = @transform_2, window_bounds = array<i64: 8, 72>}, {pipeline_mode = #tpu.pipeline_mode<synchronous>, transform_indices = @transform_3, window_bounds = array<i64: 8, 1>}, {pipeline_mode = #tpu.pipeline_mode<synchronous>, transform_indices = @transform_4, window_bounds = array<i64: 8, 72>}, {pipeline_mode = #tpu.pipeline_mode<synchronous>, transform_indices = @transform_5, window_bounds = array<i64: 8, 1>}, {pipeline_mode = #tpu.pipeline_mode<synchronous>, transform_indices = @transform_6, window_bounds = array<i64: 8, 72>}, {pipeline_mode = #tpu.pipeline_mode<synchronous>, transform_indices = @transform_7, window_bounds = array<i64: 8, 1>}, {transform_indices = @transform_8, window_bounds = array<i64: 8, 512>}]} {
    %c0 = arith.constant 0 : index
    %c0_0 = arith.constant 0 : index
    %0 = vector.load %arg2[%c0, %c0_0] : memref<9x512xf32, #tpu.memory_space<vmem>>, vector<9x512xf32>
    %1 = vector.extract_strided_slice %0 {offsets = [0, 0], sizes = [1, 512], strides = [1, 1]} : vector<9x512xf32> to vector<1x512xf32>
    %2 = vector.extract_strided_slice %0 {offsets = [1, 0], sizes = [1, 512], strides = [1, 1]} : vector<9x512xf32> to vector<1x512xf32>
    %3 = vector.extract_strided_slice %0 {offsets = [2, 0], sizes = [1, 512], strides = [1, 1]} : vector<9x512xf32> to vector<1x512xf32>
    %4 = vector.extract_strided_slice %0 {offsets = [3, 0], sizes = [1, 512], strides = [1, 1]} : vector<9x512xf32> to vector<1x512xf32>
    %5 = vector.extract_strided_slice %0 {offsets = [5, 0], sizes = [1, 512], strides = [1, 1]} : vector<9x512xf32> to vector<1x512xf32>
    %6 = vector.extract_strided_slice %0 {offsets = [6, 0], sizes = [1, 512], strides = [1, 1]} : vector<9x512xf32> to vector<1x512xf32>
    %7 = vector.extract_strided_slice %0 {offsets = [7, 0], sizes = [1, 512], strides = [1, 1]} : vector<9x512xf32> to vector<1x512xf32>
    %8 = vector.extract_strided_slice %0 {offsets = [8, 0], sizes = [1, 512], strides = [1, 1]} : vector<9x512xf32> to vector<1x512xf32>
    %c0_1 = arith.constant 0 : index
    %c0_2 = arith.constant 0 : index
    %9 = vector.load %arg3[%c0_1, %c0_2] : memref<8x72xbf16, #tpu.memory_space<vmem>>, vector<8x72xbf16>
    %c0_3 = arith.constant 0 : index
    %c0_4 = arith.constant 0 : index
    %10 = vector.load %arg4[%c0_3, %c0_4] : memref<8x1xf32, #tpu.memory_space<vmem>>, vector<8x1xf32>
    %c0_5 = arith.constant 0 : index
    %c0_6 = arith.constant 0 : index
    %11 = vector.load %arg5[%c0_5, %c0_6] : memref<8x72xbf16, #tpu.memory_space<vmem>>, vector<8x72xbf16>
    %c0_7 = arith.constant 0 : index
    %c0_8 = arith.constant 0 : index
    %12 = vector.load %arg6[%c0_7, %c0_8] : memref<8x1xf32, #tpu.memory_space<vmem>>, vector<8x1xf32>
    %c0_9 = arith.constant 0 : index
    %c0_10 = arith.constant 0 : index
    %13 = vector.load %arg7[%c0_9, %c0_10] : memref<8x72xbf16, #tpu.memory_space<vmem>>, vector<8x72xbf16>
    %c0_11 = arith.constant 0 : index
    %c0_12 = arith.constant 0 : index
    %14 = vector.load %arg8[%c0_11, %c0_12] : memref<8x1xf32, #tpu.memory_space<vmem>>, vector<8x1xf32>
    %c0_13 = arith.constant 0 : index
    %c0_14 = arith.constant 0 : index
    %15 = vector.load %arg1[%c0_13, %c0_14] : memref<8x512xf32, #tpu.memory_space<vmem>>, vector<8x512xf32>
    %c17_i32 = arith.constant 17 : i32
    %16 = tpu.dynamic_rotate %15 by %c17_i32 dim 1 : vector<8x512xf32>, i32 -> vector<8x512xf32>
    %17 = vector.broadcast %1 : vector<1x512xf32> to vector<8x512xf32>
    %18 = arith.mulf %16, %17 : vector<8x512xf32>
    %c16_i32 = arith.constant 16 : i32
    %19 = tpu.dynamic_rotate %15 by %c16_i32 dim 1 : vector<8x512xf32>, i32 -> vector<8x512xf32>
    %20 = vector.broadcast %2 : vector<1x512xf32> to vector<8x512xf32>
    %21 = arith.mulf %19, %20 : vector<8x512xf32>
    %c15_i32 = arith.constant 15 : i32
    %22 = tpu.dynamic_rotate %15 by %c15_i32 dim 1 : vector<8x512xf32>, i32 -> vector<8x512xf32>
    %23 = vector.broadcast %3 : vector<1x512xf32> to vector<8x512xf32>
    %24 = arith.mulf %22, %23 : vector<8x512xf32>
    %c1_i32 = arith.constant 1 : i32
    %25 = tpu.dynamic_rotate %15 by %c1_i32 dim 1 : vector<8x512xf32>, i32 -> vector<8x512xf32>
    %26 = vector.broadcast %4 : vector<1x512xf32> to vector<8x512xf32>
    %27 = arith.mulf %25, %26 : vector<8x512xf32>
    %c511_i32 = arith.constant 511 : i32
    %28 = tpu.dynamic_rotate %15 by %c511_i32 dim 1 : vector<8x512xf32>, i32 -> vector<8x512xf32>
    %29 = vector.broadcast %5 : vector<1x512xf32> to vector<8x512xf32>
    %30 = arith.mulf %28, %29 : vector<8x512xf32>
    %c497_i32 = arith.constant 497 : i32
    %31 = tpu.dynamic_rotate %15 by %c497_i32 dim 1 : vector<8x512xf32>, i32 -> vector<8x512xf32>
    %32 = vector.broadcast %6 : vector<1x512xf32> to vector<8x512xf32>
    %33 = arith.mulf %31, %32 : vector<8x512xf32>
    %c496_i32 = arith.constant 496 : i32
    %34 = tpu.dynamic_rotate %15 by %c496_i32 dim 1 : vector<8x512xf32>, i32 -> vector<8x512xf32>
    %35 = vector.broadcast %7 : vector<1x512xf32> to vector<8x512xf32>
    %36 = arith.mulf %34, %35 : vector<8x512xf32>
    %c495_i32 = arith.constant 495 : i32
    %37 = tpu.dynamic_rotate %15 by %c495_i32 dim 1 : vector<8x512xf32>, i32 -> vector<8x512xf32>
    %38 = vector.broadcast %8 : vector<1x512xf32> to vector<8x512xf32>
    %39 = arith.mulf %37, %38 : vector<8x512xf32>
    %40 = tpu.concatenate %18, %21, %24, %27, %15, %30, %33, %36, %39 in 0 : vector<8x512xf32>, vector<8x512xf32>, vector<8x512xf32>, vector<8x512xf32>, vector<8x512xf32>, vector<8x512xf32>, vector<8x512xf32>, vector<8x512xf32>, vector<8x512xf32> -> vector<72x512xf32>
    %41 = arith.truncf %40 : vector<72x512xf32> to vector<72x512xbf16>
    %cst = arith.constant dense<0.000000e+00> : vector<8x512xf32>
    %42 = tpu.matmul %9, %41, %cst {dimension_numbers = #tpu.dot_dimension_numbers<[1], [0], [0], [1], [0, 0, 1, 1], [], []>} : vector<8x72xbf16>, vector<72x512xbf16>, vector<8x512xf32> -> vector<8x512xf32>
    %43 = vector.broadcast %10 : vector<8x1xf32> to vector<8x512xf32>
    %44 = arith.addf %42, %43 : vector<8x512xf32>
    %cst_15 = arith.constant 0.000000e+00 : f32
    %45 = vector.broadcast %cst_15 : f32 to vector<8x512xf32>
    %46 = arith.maximumf %44, %45 : vector<8x512xf32>
    %c17_i32_16 = arith.constant 17 : i32
    %47 = tpu.dynamic_rotate %46 by %c17_i32_16 dim 1 : vector<8x512xf32>, i32 -> vector<8x512xf32>
    %48 = vector.broadcast %1 : vector<1x512xf32> to vector<8x512xf32>
    %49 = arith.mulf %47, %48 : vector<8x512xf32>
    %c16_i32_17 = arith.constant 16 : i32
    %50 = tpu.dynamic_rotate %46 by %c16_i32_17 dim 1 : vector<8x512xf32>, i32 -> vector<8x512xf32>
    %51 = vector.broadcast %2 : vector<1x512xf32> to vector<8x512xf32>
    %52 = arith.mulf %50, %51 : vector<8x512xf32>
    %c15_i32_18 = arith.constant 15 : i32
    %53 = tpu.dynamic_rotate %46 by %c15_i32_18 dim 1 : vector<8x512xf32>, i32 -> vector<8x512xf32>
    %54 = vector.broadcast %3 : vector<1x512xf32> to vector<8x512xf32>
    %55 = arith.mulf %53, %54 : vector<8x512xf32>
    %c1_i32_19 = arith.constant 1 : i32
    %56 = tpu.dynamic_rotate %46 by %c1_i32_19 dim 1 : vector<8x512xf32>, i32 -> vector<8x512xf32>
    %57 = vector.broadcast %4 : vector<1x512xf32> to vector<8x512xf32>
    %58 = arith.mulf %56, %57 : vector<8x512xf32>
    %c511_i32_20 = arith.constant 511 : i32
    %59 = tpu.dynamic_rotate %46 by %c511_i32_20 dim 1 : vector<8x512xf32>, i32 -> vector<8x512xf32>
    %60 = vector.broadcast %5 : vector<1x512xf32> to vector<8x512xf32>
    %61 = arith.mulf %59, %60 : vector<8x512xf32>
    %c497_i32_21 = arith.constant 497 : i32
    %62 = tpu.dynamic_rotate %46 by %c497_i32_21 dim 1 : vector<8x512xf32>, i32 -> vector<8x512xf32>
    %63 = vector.broadcast %6 : vector<1x512xf32> to vector<8x512xf32>
    %64 = arith.mulf %62, %63 : vector<8x512xf32>
    %c496_i32_22 = arith.constant 496 : i32
    %65 = tpu.dynamic_rotate %46 by %c496_i32_22 dim 1 : vector<8x512xf32>, i32 -> vector<8x512xf32>
    %66 = vector.broadcast %7 : vector<1x512xf32> to vector<8x512xf32>
    %67 = arith.mulf %65, %66 : vector<8x512xf32>
    %c495_i32_23 = arith.constant 495 : i32
    %68 = tpu.dynamic_rotate %46 by %c495_i32_23 dim 1 : vector<8x512xf32>, i32 -> vector<8x512xf32>
    %69 = vector.broadcast %8 : vector<1x512xf32> to vector<8x512xf32>
    %70 = arith.mulf %68, %69 : vector<8x512xf32>
    %71 = tpu.concatenate %49, %52, %55, %58, %46, %61, %64, %67, %70 in 0 : vector<8x512xf32>, vector<8x512xf32>, vector<8x512xf32>, vector<8x512xf32>, vector<8x512xf32>, vector<8x512xf32>, vector<8x512xf32>, vector<8x512xf32>, vector<8x512xf32> -> vector<72x512xf32>
    %72 = arith.truncf %71 : vector<72x512xf32> to vector<72x512xbf16>
    %cst_24 = arith.constant dense<0.000000e+00> : vector<8x512xf32>
    %73 = tpu.matmul %11, %72, %cst_24 {dimension_numbers = #tpu.dot_dimension_numbers<[1], [0], [0], [1], [0, 0, 1, 1], [], []>} : vector<8x72xbf16>, vector<72x512xbf16>, vector<8x512xf32> -> vector<8x512xf32>
    %74 = vector.broadcast %12 : vector<8x1xf32> to vector<8x512xf32>
    %75 = arith.addf %73, %74 : vector<8x512xf32>
    %cst_25 = arith.constant 0.000000e+00 : f32
    %76 = vector.broadcast %cst_25 : f32 to vector<8x512xf32>
    %77 = arith.maximumf %75, %76 : vector<8x512xf32>
    %78 = arith.addf %77, %46 : vector<8x512xf32>
    %c17_i32_26 = arith.constant 17 : i32
    %79 = tpu.dynamic_rotate %78 by %c17_i32_26 dim 1 : vector<8x512xf32>, i32 -> vector<8x512xf32>
    %80 = vector.broadcast %1 : vector<1x512xf32> to vector<8x512xf32>
    %81 = arith.mulf %79, %80 : vector<8x512xf32>
    %c16_i32_27 = arith.constant 16 : i32
    %82 = tpu.dynamic_rotate %78 by %c16_i32_27 dim 1 : vector<8x512xf32>, i32 -> vector<8x512xf32>
    %83 = vector.broadcast %2 : vector<1x512xf32> to vector<8x512xf32>
    %84 = arith.mulf %82, %83 : vector<8x512xf32>
    %c15_i32_28 = arith.constant 15 : i32
    %85 = tpu.dynamic_rotate %78 by %c15_i32_28 dim 1 : vector<8x512xf32>, i32 -> vector<8x512xf32>
    %86 = vector.broadcast %3 : vector<1x512xf32> to vector<8x512xf32>
    %87 = arith.mulf %85, %86 : vector<8x512xf32>
    %c1_i32_29 = arith.constant 1 : i32
    %88 = tpu.dynamic_rotate %78 by %c1_i32_29 dim 1 : vector<8x512xf32>, i32 -> vector<8x512xf32>
    %89 = vector.broadcast %4 : vector<1x512xf32> to vector<8x512xf32>
    %90 = arith.mulf %88, %89 : vector<8x512xf32>
    %c511_i32_30 = arith.constant 511 : i32
    %91 = tpu.dynamic_rotate %78 by %c511_i32_30 dim 1 : vector<8x512xf32>, i32 -> vector<8x512xf32>
    %92 = vector.broadcast %5 : vector<1x512xf32> to vector<8x512xf32>
    %93 = arith.mulf %91, %92 : vector<8x512xf32>
    %c497_i32_31 = arith.constant 497 : i32
    %94 = tpu.dynamic_rotate %78 by %c497_i32_31 dim 1 : vector<8x512xf32>, i32 -> vector<8x512xf32>
    %95 = vector.broadcast %6 : vector<1x512xf32> to vector<8x512xf32>
    %96 = arith.mulf %94, %95 : vector<8x512xf32>
    %c496_i32_32 = arith.constant 496 : i32
    %97 = tpu.dynamic_rotate %78 by %c496_i32_32 dim 1 : vector<8x512xf32>, i32 -> vector<8x512xf32>
    %98 = vector.broadcast %7 : vector<1x512xf32> to vector<8x512xf32>
    %99 = arith.mulf %97, %98 : vector<8x512xf32>
    %c495_i32_33 = arith.constant 495 : i32
    %100 = tpu.dynamic_rotate %78 by %c495_i32_33 dim 1 : vector<8x512xf32>, i32 -> vector<8x512xf32>
    %101 = vector.broadcast %8 : vector<1x512xf32> to vector<8x512xf32>
    %102 = arith.mulf %100, %101 : vector<8x512xf32>
    %103 = tpu.concatenate %81, %84, %87, %90, %78, %93, %96, %99, %102 in 0 : vector<8x512xf32>, vector<8x512xf32>, vector<8x512xf32>, vector<8x512xf32>, vector<8x512xf32>, vector<8x512xf32>, vector<8x512xf32>, vector<8x512xf32>, vector<8x512xf32> -> vector<72x512xf32>
    %104 = arith.truncf %103 : vector<72x512xf32> to vector<72x512xbf16>
    %cst_34 = arith.constant dense<0.000000e+00> : vector<8x512xf32>
    %105 = tpu.matmul %13, %104, %cst_34 {dimension_numbers = #tpu.dot_dimension_numbers<[1], [0], [0], [1], [0, 0, 1, 1], [], []>} : vector<8x72xbf16>, vector<72x512xbf16>, vector<8x512xf32> -> vector<8x512xf32>
    %106 = vector.broadcast %14 : vector<8x1xf32> to vector<8x512xf32>
    %107 = arith.addf %105, %106 : vector<8x512xf32>
    %c0_35 = arith.constant 0 : index
    %c0_36 = arith.constant 0 : index
    %108 = vector.load %arg9[%c0_35, %c0_36] : memref<8x512xf32, #tpu.memory_space<vmem>>, vector<8x512xf32>
    tpu.vector_store %arg9[%c0_35, %c0_36], %107 {strides = array<i32>} : memref<8x512xf32, #tpu.memory_space<vmem>>, vector<8x512xf32>,
    return
  }
  func.func @transform_0(%arg0: i32) -> (i32, i32) {
    %c0_i32 = arith.constant 0 : i32
    %c0_i32_0 = arith.constant 0 : i32
    return %c0_i32, %arg0 : i32, i32
  }
  func.func @transform_1(%arg0: i32) -> (i32, i32) {
    %c0_i32 = arith.constant 0 : i32
    %c0_i32_0 = arith.constant 0 : i32
    %c0_i32_1 = arith.constant 0 : i32
    return %c0_i32, %c0_i32_0 : i32, i32
  }
  func.func @transform_2(%arg0: i32) -> (i32, i32) {
    %c0_i32 = arith.constant 0 : i32
    %c0_i32_0 = arith.constant 0 : i32
    %c0_i32_1 = arith.constant 0 : i32
    return %c0_i32, %c0_i32_0 : i32, i32
  }
  func.func @transform_3(%arg0: i32) -> (i32, i32) {
    %c0_i32 = arith.constant 0 : i32
    %c0_i32_0 = arith.constant 0 : i32
    %c0_i32_1 = arith.constant 0 : i32
    return %c0_i32, %c0_i32_0 : i32, i32
  }
  func.func @transform_4(%arg0: i32) -> (i32, i32) {
    %c0_i32 = arith.constant 0 : i32
    %c0_i32_0 = arith.constant 0 : i32
    %c0_i32_1 = arith.constant 0 : i32
    return %c0_i32, %c0_i32_0 : i32, i32
  }
  func.func @transform_5(%arg0: i32) -> (i32, i32) {
    %c0_i32 = arith.constant 0 : i32
    %c0_i32_0 = arith.constant 0 : i32
    %c0_i32_1 = arith.constant 0 : i32
    return %c0_i32, %c0_i32_0 : i32, i32
  }
  func.func @transform_6(%arg0: i32) -> (i32, i32) {
    %c0_i32 = arith.constant 0 : i32
    %c0_i32_0 = arith.constant 0 : i32
    %c0_i32_1 = arith.constant 0 : i32
    return %c0_i32, %c0_i32_0 : i32, i32
  }
  func.func @transform_7(%arg0: i32) -> (i32, i32) {
    %c0_i32 = arith.constant 0 : i32
    %c0_i32_0 = arith.constant 0 : i32
    %c0_i32_1 = arith.constant 0 : i32
    return %c0_i32, %c0_i32_0 : i32, i32
  }
  func.func @transform_8(%arg0: i32) -> (i32, i32) {
    %c0_i32 = arith.constant 0 : i32
    %c0_i32_0 = arith.constant 0 : i32
    return %c0_i32, %arg0 : i32, i32
  }
}

</mosaic_0001>

<llo_original>
// kernel: forward.1
$region0: #{forward.1}
  #allocation0 [shape = 'u32[]', space=smem, size = 0x4, offset = 0x4, fixed_abs, tag = 'smem constant byte address 0x4 - core index']
  #allocation1 [shape = 'u32[144,128]{1,0:T(1,128)}', space=vmem, size = 0x12000, scoped, tag = 'internal scratch']
  %s0 = inlined_call_operand.vmem [shape: f32[8,512], index: 0, kind: input, shape index: {}]
  %s1 = inlined_call_operand.vmem [shape: f32[9,512], index: 1, kind: input, shape index: {}]
  %s2 = inlined_call_operand.vmem [shape: bf16[8,72], index: 2, kind: input, shape index: {}]
  %s3 = inlined_call_operand.vmem [shape: f32[8,1], index: 3, kind: input, shape index: {}]
  %s4 = inlined_call_operand.vmem [shape: bf16[8,72], index: 4, kind: input, shape index: {}]
  %s5 = inlined_call_operand.vmem [shape: f32[8,1], index: 5, kind: input, shape index: {}]
  %s6 = inlined_call_operand.vmem [shape: bf16[8,72], index: 6, kind: input, shape index: {}]
  %s7 = inlined_call_operand.vmem [shape: f32[8,1], index: 7, kind: input, shape index: {}]
  %s8 = inlined_call_operand.vmem [shape: f32[8,512], index: 8, kind: output, shape index: {}]
  %s9 = sld [smem:[#allocation0]]
  $region42: #{forward.1} parent=0
    _
  %s11 = ssub.s32 1, %s9
  %s12 = scalar_select 0, %s11, %s9
  // Predicated region
  $region2: #{forward.1} parent=0 // pred_check
    _
  $region3: #{forward.1} parent=0 // pred_check_branch
    %14 = sbr.rel (0) target = $region5
  $region4: #{forward.1} parent=0 // pred_region
    _
  $region5: #{forward.1} parent=0 // pred_fallthru
    _
  // Predicated region
  $region6: #{forward.1} parent=0 // pred_check
    _
  $region7: #{forward.1} parent=0 // pred_check_branch
    %16 = sbr.rel (0) target = $region9
  $region8: #{forward.1} parent=0 // pred_region
    _
  $region9: #{forward.1} parent=0 // pred_fallthru
    _
  // Predicated region
  $region10: #{forward.1} parent=0 // pred_check
    _
  $region11: #{forward.1} parent=0 // pred_check_branch
    %18 = sbr.rel (0) target = $region13
  $region12: #{forward.1} parent=0 // pred_region
    _
  $region13: #{forward.1} parent=0 // pred_fallthru
    _
  // Predicated region
  $region14: #{forward.1} parent=0 // pred_check
    _
  $region15: #{forward.1} parent=0 // pred_check_branch
    %20 = sbr.rel (0) target = $region17
  $region16: #{forward.1} parent=0 // pred_region
    _
  $region17: #{forward.1} parent=0 // pred_fallthru
    _
  // Predicated region
  $region18: #{forward.1} parent=0 // pred_check
    _
  $region19: #{forward.1} parent=0 // pred_check_branch
    %22 = sbr.rel (0) target = $region21
  $region20: #{forward.1} parent=0 // pred_region
    _
  $region21: #{forward.1} parent=0 // pred_fallthru
    _
  // Predicated region
  $region22: #{forward.1} parent=0 // pred_check
    _
  $region23: #{forward.1} parent=0 // pred_check_branch
    %24 = sbr.rel (0) target = $region25
  $region24: #{forward.1} parent=0 // pred_region
    _
  $region25: #{forward.1} parent=0 // pred_fallthru
    _
  // Predicated region
  $region26: #{forward.1} parent=0 // pred_check
    _
  $region27: #{forward.1} parent=0 // pred_check_branch
    %26 = sbr.rel (0) target = $region29
  $region28: #{forward.1} parent=0 // pred_region
    _
  $region29: #{forward.1} parent=0 // pred_fallthru
    _
  // Predicated region
  $region30: #{forward.1} parent=0 // pred_check
    _
  $region31: #{forward.1} parent=0 // pred_check_branch
    %28 = sbr.rel (0) target = $region33
  $region32: #{forward.1} parent=0 // pred_region
    _
  $region33: #{forward.1} parent=0 // pred_fallthru
    _
  %v30 = vld [vmem:[%s1] sm:$0xff]
  %v31 = vld [vmem:[%s1 + $0x8] sm:$0xff]
  %v32 = vld [vmem:[%s1 + $0x10] sm:$0xff]
  %v33 = vld [vmem:[%s1 + $0x18] sm:$0xff]
  %v34 = vld [vmem:[%s1 + $0x20] sm:$0x1]
  %v35 = vld [vmem:[%s1 + $0x28] sm:$0x1]
  %v36 = vld [vmem:[%s1 + $0x30] sm:$0x1]
  %v37 = vld [vmem:[%s1 + $0x38] sm:$0x1]
  %v38 = vld [vmem:[%s2] sm:$0xf]
  %v39 = vld [vmem:[%s3] sm:$0xff]
  %v40 = vld [vmem:[%s4] sm:$0xf]
  %v41 = vld [vmem:[%s5] sm:$0xff]
  %v42 = vld [vmem:[%s6] sm:$0xf]
  %v43 = vld [vmem:[%s7] sm:$0xff]
  %v44 = vld [vmem:[%s0] sm:$0xff]
  %v45 = vld [vmem:[%s0 + $0x8] sm:$0xff]
  %v46 = vld [vmem:[%s0 + $0x10] sm:$0xff]
  %v47 = vld [vmem:[%s0 + $0x18] sm:$0xff]
  %48 = vrot.lane.b32.xlu0 %v44, 17
  %v49 = vpop.permute.xlu0 %48
  %50 = vrot.lane.b32.xlu0 %v45, 17
  %v51 = vpop.permute.xlu0 %50
  %52 = vrot.lane.b32.xlu0 %v46, 17
  %v53 = vpop.permute.xlu0 %52
  %54 = vrot.lane.b32.xlu0 %v47, 17
  %v55 = vpop.permute.xlu0 %54
  %v56 = vlaneseq
  %v57 = vand.u32 %v56, 127
  %vm58 = vcmp.lt.s32.totalorder %v57, 17
  %v59 = vsel %vm58, %v53, %v55
  %v60 = vsel %vm58, %v51, %v53
  %v61 = vsel %vm58, %v49, %v51
  %v62 = vsel %vm58, %v55, %v49
  %v63 = vlaneseq
  %v64 = vshrl.u32 %v63, 7
  %v65 = vsub.s32 0, %v64
  %v66 = vrot.slane %v30, %v65
  %v67 = vlaneseq
  %v68 = vshrl.u32 %v67, 7
  %v69 = vsub.s32 0, %v68
  %v70 = vrot.slane %v31, %v69
  %v71 = vlaneseq
  %v72 = vshrl.u32 %v71, 7
  %v73 = vsub.s32 0, %v72
  %v74 = vrot.slane %v32, %v73
  %v75 = vlaneseq
  %v76 = vshrl.u32 %v75, 7
  %v77 = vsub.s32 0, %v76
  %v78 = vrot.slane %v33, %v77
  %v79 = vmul.f32 %v62, %v66
  %v80 = vmul.f32 %v61, %v70
  %v81 = vmul.f32 %v60, %v74
  %v82 = vmul.f32 %v59, %v78
  %83 = vrot.lane.b32.xlu0 %v44, 16
  %v84 = vpop.permute.xlu0 %83
  %85 = vrot.lane.b32.xlu0 %v45, 16
  %v86 = vpop.permute.xlu0 %85
  %87 = vrot.lane.b32.xlu0 %v46, 16
  %v88 = vpop.permute.xlu0 %87
  %89 = vrot.lane.b32.xlu0 %v47, 16
  %v90 = vpop.permute.xlu0 %89
  %vm91 = vcmp.lt.s32.totalorder %v57, 16
  %v92 = vsel %vm91, %v88, %v90
  %v93 = vsel %vm91, %v86, %v88
  %v94 = vsel %vm91, %v84, %v86
  %v95 = vsel %vm91, %v90, %v84
  %v96 = vlaneseq
  %v97 = vshrl.u32 %v96, 7
  %v98 = vsub.s32 1, %v97
  %v99 = vrot.slane %v30, %v98
  %v100 = vlaneseq
  %v101 = vshrl.u32 %v100, 7
  %v102 = vsub.s32 1, %v101
  %v103 = vrot.slane %v31, %v102
  %v104 = vlaneseq
  %v105 = vshrl.u32 %v104, 7
  %v106 = vsub.s32 1, %v105
  %v107 = vrot.slane %v32, %v106
  %v108 = vlaneseq
  %v109 = vshrl.u32 %v108, 7
  %v110 = vsub.s32 1, %v109
  %v111 = vrot.slane %v33, %v110
  %v112 = vmul.f32 %v95, %v99
  %v113 = vmul.f32 %v94, %v103
  %v114 = vmul.f32 %v93, %v107
  %v115 = vmul.f32 %v92, %v111
  %116 = vrot.lane.b32.xlu0 %v44, 15
  %v117 = vpop.permute.xlu0 %116
  %118 = vrot.lane.b32.xlu0 %v45, 15
  %v119 = vpop.permute.xlu0 %118
  %120 = vrot.lane.b32.xlu0 %v46, 15
  %v121 = vpop.permute.xlu0 %120
  %122 = vrot.lane.b32.xlu0 %v47, 15
  %v123 = vpop.permute.xlu0 %122
  %vm124 = vcmp.lt.s32.totalorder %v57, 15
  %v125 = vsel %vm124, %v121, %v123
  %v126 = vsel %vm124, %v119, %v121
  %v127 = vsel %vm124, %v117, %v119
  %v128 = vsel %vm124, %v123, %v117
  %v129 = vlaneseq
  %v130 = vshrl.u32 %v129, 7
  %v131 = vsub.s32 2, %v130
  %v132 = vrot.slane %v30, %v131
  %v133 = vlaneseq
  %v134 = vshrl.u32 %v133, 7
  %v135 = vsub.s32 2, %v134
  %v136 = vrot.slane %v31, %v135
  %v137 = vlaneseq
  %v138 = vshrl.u32 %v137, 7
  %v139 = vsub.s32 2, %v138
  %v140 = vrot.slane %v32, %v139
  %v141 = vlaneseq
  %v142 = vshrl.u32 %v141, 7
  %v143 = vsub.s32 2, %v142
  %v144 = vrot.slane %v33, %v143
  %v145 = vmul.f32 %v128, %v132
  %v146 = vmul.f32 %v127, %v136
  %v147 = vmul.f32 %v126, %v140
  %v148 = vmul.f32 %v125, %v144
  %149 = vrot.lane.b32.xlu0 %v44, 1
  %v150 = vpop.permute.xlu0 %149
  %151 = vrot.lane.b32.xlu0 %v45, 1
  %v152 = vpop.permute.xlu0 %151
  %153 = vrot.lane.b32.xlu0 %v46, 1
  %v154 = vpop.permute.xlu0 %153
  %155 = vrot.lane.b32.xlu0 %v47, 1
  %v156 = vpop.permute.xlu0 %155
  %vm157 = vcmp.lt.s32.totalorder %v57, 1
  %v158 = vsel %vm157, %v154, %v156
  %v159 = vsel %vm157, %v152, %v154
  %v160 = vsel %vm157, %v150, %v152
  %v161 = vsel %vm157, %v156, %v150
  %v162 = vlaneseq
  %v163 = vshrl.u32 %v162, 7
  %v164 = vsub.s32 3, %v163
  %v165 = vrot.slane %v30, %v164
  %v166 = vlaneseq
  %v167 = vshrl.u32 %v166, 7
  %v168 = vsub.s32 3, %v167
  %v169 = vrot.slane %v31, %v168
  %v170 = vlaneseq
  %v171 = vshrl.u32 %v170, 7
  %v172 = vsub.s32 3, %v171
  %v173 = vrot.slane %v32, %v172
  %v174 = vlaneseq
  %v175 = vshrl.u32 %v174, 7
  %v176 = vsub.s32 3, %v175
  %v177 = vrot.slane %v33, %v176
  %v178 = vmul.f32 %v161, %v165
  %v179 = vmul.f32 %v160, %v169
  %v180 = vmul.f32 %v159, %v173
  %v181 = vmul.f32 %v158, %v177
  %182 = vrot.lane.b32.xlu0 %v44, 127
  %v183 = vpop.permute.xlu0 %182
  %184 = vrot.lane.b32.xlu0 %v45, 127
  %v185 = vpop.permute.xlu0 %184
  %186 = vrot.lane.b32.xlu0 %v46, 127
  %v187 = vpop.permute.xlu0 %186
  %188 = vrot.lane.b32.xlu0 %v47, 127
  %v189 = vpop.permute.xlu0 %188
  %vm190 = vcmp.lt.s32.totalorder %v57, 127
  %v191 = vsel %vm190, %v187, %v189
  %v192 = vsel %vm190, %v185, %v187
  %v193 = vsel %vm190, %v183, %v185
  %v194 = vsel %vm190, %v189, %v183
  %v195 = vlaneseq
  %v196 = vshrl.u32 %v195, 7
  %v197 = vsub.s32 5, %v196
  %v198 = vrot.slane %v30, %v197
  %v199 = vlaneseq
  %v200 = vshrl.u32 %v199, 7
  %v201 = vsub.s32 5, %v200
  %v202 = vrot.slane %v31, %v201
  %v203 = vlaneseq
  %v204 = vshrl.u32 %v203, 7
  %v205 = vsub.s32 5, %v204
  %v206 = vrot.slane %v32, %v205
  %v207 = vlaneseq
  %v208 = vshrl.u32 %v207, 7
  %v209 = vsub.s32 5, %v208
  %v210 = vrot.slane %v33, %v209
  %v211 = vmul.f32 %v193, %v198
  %v212 = vmul.f32 %v192, %v202
  %v213 = vmul.f32 %v191, %v206
  %v214 = vmul.f32 %v194, %v210
  %215 = vrot.lane.b32.xlu0 %v44, 113
  %v216 = vpop.permute.xlu0 %215
  %217 = vrot.lane.b32.xlu0 %v45, 113
  %v218 = vpop.permute.xlu0 %217
  %219 = vrot.lane.b32.xlu0 %v46, 113
  %v220 = vpop.permute.xlu0 %219
  %221 = vrot.lane.b32.xlu0 %v47, 113
  %v222 = vpop.permute.xlu0 %221
  %vm223 = vcmp.lt.s32.totalorder %v57, 113
  %v224 = vsel %vm223, %v220, %v222
  %v225 = vsel %vm223, %v218, %v220
  %v226 = vsel %vm223, %v216, %v218
  %v227 = vsel %vm223, %v222, %v216
  %v228 = vlaneseq
  %v229 = vshrl.u32 %v228, 7
  %v230 = vsub.s32 6, %v229
  %v231 = vrot.slane %v30, %v230
  %v232 = vlaneseq
  %v233 = vshrl.u32 %v232, 7
  %v234 = vsub.s32 6, %v233
  %v235 = vrot.slane %v31, %v234
  %v236 = vlaneseq
  %v237 = vshrl.u32 %v236, 7
  %v238 = vsub.s32 6, %v237
  %v239 = vrot.slane %v32, %v238
  %v240 = vlaneseq
  %v241 = vshrl.u32 %v240, 7
  %v242 = vsub.s32 6, %v241
  %v243 = vrot.slane %v33, %v242
  %v244 = vmul.f32 %v226, %v231
  %v245 = vmul.f32 %v225, %v235
  %v246 = vmul.f32 %v224, %v239
  %v247 = vmul.f32 %v227, %v243
  %248 = vrot.lane.b32.xlu0 %v44, 112
  %v249 = vpop.permute.xlu0 %248
  %250 = vrot.lane.b32.xlu0 %v45, 112
  %v251 = vpop.permute.xlu0 %250
  %252 = vrot.lane.b32.xlu0 %v46, 112
  %v253 = vpop.permute.xlu0 %252
  %254 = vrot.lane.b32.xlu0 %v47, 112
  %v255 = vpop.permute.xlu0 %254
  %vm256 = vcmp.lt.s32.totalorder %v57, 112
  %v257 = vsel %vm256, %v253, %v255
  %v258 = vsel %vm256, %v251, %v253
  %v259 = vsel %vm256, %v249, %v251
  %v260 = vsel %vm256, %v255, %v249
  %v261 = vlaneseq
  %v262 = vshrl.u32 %v261, 7
  %v263 = vsub.s32 7, %v262
  %v264 = vrot.slane %v30, %v263
  %v265 = vlaneseq
  %v266 = vshrl.u32 %v265, 7
  %v267 = vsub.s32 7, %v266
  %v268 = vrot.slane %v31, %v267
  %v269 = vlaneseq
  %v270 = vshrl.u32 %v269, 7
  %v271 = vsub.s32 7, %v270
  %v272 = vrot.slane %v32, %v271
  %v273 = vlaneseq
  %v274 = vshrl.u32 %v273, 7
  %v275 = vsub.s32 7, %v274
  %v276 = vrot.slane %v33, %v275
  %v277 = vmul.f32 %v259, %v264
  %v278 = vmul.f32 %v258, %v268
  %v279 = vmul.f32 %v257, %v272
  %v280 = vmul.f32 %v260, %v276
  %281 = vrot.lane.b32.xlu0 %v44, 111
  %v282 = vpop.permute.xlu0 %281
  %283 = vrot.lane.b32.xlu0 %v45, 111
  %v284 = vpop.permute.xlu0 %283
  %285 = vrot.lane.b32.xlu0 %v46, 111
  %v286 = vpop.permute.xlu0 %285
  %287 = vrot.lane.b32.xlu0 %v47, 111
  %v288 = vpop.permute.xlu0 %287
  %vm289 = vcmp.lt.s32.totalorder %v57, 111
  %v290 = vsel %vm289, %v286, %v288
  %v291 = vsel %vm289, %v284, %v286
  %v292 = vsel %vm289, %v282, %v284
  %v293 = vsel %vm289, %v288, %v282
  %v294 = vlaneseq
  %v295 = vshrl.u32 %v294, 7
  %v296 = vsub.s32 0, %v295
  %v297 = vrot.slane %v34, %v296
  %v298 = vlaneseq
  %v299 = vshrl.u32 %v298, 7
  %v300 = vsub.s32 0, %v299
  %v301 = vrot.slane %v35, %v300
  %v302 = vlaneseq
  %v303 = vshrl.u32 %v302, 7
  %v304 = vsub.s32 0, %v303
  %v305 = vrot.slane %v36, %v304
  %v306 = vlaneseq
  %v307 = vshrl.u32 %v306, 7
  %v308 = vsub.s32 0, %v307
  %v309 = vrot.slane %v37, %v308
  %v310 = vmul.f32 %v292, %v297
  %v311 = vmul.f32 %v291, %v301
  %v312 = vmul.f32 %v290, %v305
  %v313 = vmul.f32 %v293, %v309
  %v314 = vpack.c.bf16 %v112, %v79
  %v315 = vpack.c.bf16 %v113, %v80
  %v316 = vpack.c.bf16 %v114, %v81
  %v317 = vpack.c.bf16 %v115, %v82
  %v318 = vpack.c.bf16 %v178, %v145
  %v319 = vpack.c.bf16 %v179, %v146
  %v320 = vpack.c.bf16 %v180, %v147
  %v321 = vpack.c.bf16 %v181, %v148
  %v322 = vpack.c.bf16 %v211, %v44
  %v323 = vpack.c.bf16 %v212, %v45
  %v324 = vpack.c.bf16 %v213, %v46
  %v325 = vpack.c.bf16 %v214, %v47
  %v326 = vpack.c.bf16 %v277, %v244
  %v327 = vpack.c.bf16 %v278, %v245
  %v328 = vpack.c.bf16 %v279, %v246
  %v329 = vpack.c.bf16 %v280, %v247
  %v330 = vpack.c.bf16 %v310, %v310
  %v331 = vpack.c.bf16 %v311, %v311
  %v332 = vpack.c.bf16 %v312, %v312
  %v333 = vpack.c.bf16 %v313, %v313
  %335 = vset.pattern.permute.xlu0 0
  %336 = vperm.xlu0 %335, %v39
  %v337 = vpop.permute.xlu0 %336
  %vm339 = vcmask 588800
  %v341 = vsel %vm339, %v38, 0
  %vm343 = vcmask 1043456
  %v345 = vsel %vm343, %v330, 0
  %v348 = vsel %vm343, %v331, 0
  %v351 = vsel %vm343, %v332, 0
  %v354 = vsel %vm343, %v333, 0
  %356 = vmatprep.subr.bf16.mxu0 %v315
  %357 = vmatpush1.bf16.msra.mxu0 %v314
  %358 = vmatprep.subr.bf16.mxu0 %v319
  %359 = vmatpush1.bf16.msra.mxu0 %v318
  %360 = vmatprep.subr.bf16.mxu0 %v323
  %361 = vmatpush1.bf16.msra.mxu0 %v322
  %362 = vmatprep.subr.bf16.mxu0 %v327
  %363 = vmatpush1.bf16.msra.mxu0 %v326
  %364 = vmatprep.subr.bf16.mxu0 %v348
  %365 = vmatpush1.bf16.msra.mxu0 %v345
  %366 = vmatprep.subr.bf16.mxu0 0
  %367 = vmatpush1.bf16.msra.mxu0 0
  %368 = vmatprep.subr.bf16.mxu0 0
  %369 = vmatpush1.bf16.msra.mxu0 0
  %370 = vmatprep.subr.bf16.mxu0 0
  %371 = vmatpush1.bf16.msra.mxu0 0
  %372 = vmatprep.subr.bf16.mxu0 0
  %373 = vmatpush1.bf16.msra.mxu0 0
  %374 = vmatprep.subr.bf16.mxu0 0
  %375 = vmatpush1.bf16.msra.mxu0 0
  %376 = vmatprep.subr.bf16.mxu0 0
  %377 = vmatpush1.bf16.msra.mxu0 0
  %378 = vmatprep.subr.bf16.mxu0 0
  %379 = vmatpush1.bf16.msra.mxu0 0
  %380 = vmatprep.subr.bf16.mxu0 0
  %381 = vmatpush1.bf16.msra.mxu0 0
  %382 = vmatprep.subr.bf16.mxu0 0
  %383 = vmatpush1.bf16.msra.mxu0 0
  %384 = vmatprep.subr.bf16.mxu0 0
  %385 = vmatpush1.bf16.msra.mxu0 0
  %386 = vmatprep.subr.bf16.mxu0 0
  %387 = vmatpush1.bf16.msra.mxu0 0
  %388 = vmatprep.mubr.bf16.mxu0 0
  %389 = vmatmul.mubr.bf16.gmra.mrb[0].mxu0 %v341
  %v390 = vpop.f32.mrb[0].mxu0
  %v391 = vadd.f32 %v337, %v390
  %v392 = vpop.f32.mrb[0].mxu0
  %v393 = vadd.f32 %v337, %v392
  %v394 = vpop.f32.mrb[0].mxu0
  %v395 = vpop.f32.mrb[0].mxu0
  %396 = vdwg.mxu0
  %397 = vmatprep.subr.bf16.mxu0 %v317
  %398 = vmatpush1.bf16.msra.mxu0 %v316
  %399 = vmatprep.subr.bf16.mxu0 %v321
  %400 = vmatpush1.bf16.msra.mxu0 %v320
  %401 = vmatprep.subr.bf16.mxu0 %v325
  %402 = vmatpush1.bf16.msra.mxu0 %v324
  %403 = vmatprep.subr.bf16.mxu0 %v329
  %404 = vmatpush1.bf16.msra.mxu0 %v328
  %405 = vmatprep.subr.bf16.mxu0 %v354
  %406 = vmatpush1.bf16.msra.mxu0 %v351
  %407 = vmatprep.subr.bf16.mxu0 0
  %408 = vmatpush1.bf16.msra.mxu0 0
  %409 = vmatprep.subr.bf16.mxu0 0
  %410 = vmatpush1.bf16.msra.mxu0 0
  %411 = vmatprep.subr.bf16.mxu0 0
  %412 = vmatpush1.bf16.msra.mxu0 0
  %413 = vmatprep.subr.bf16.mxu0 0
  %414 = vmatpush1.bf16.msra.mxu0 0
  %415 = vmatprep.subr.bf16.mxu0 0
  %416 = vmatpush1.bf16.msra.mxu0 0
  %417 = vmatprep.subr.bf16.mxu0 0
  %418 = vmatpush1.bf16.msra.mxu0 0
  %419 = vmatprep.subr.bf16.mxu0 0
  %420 = vmatpush1.bf16.msra.mxu0 0
  %421 = vmatprep.subr.bf16.mxu0 0
  %422 = vmatpush1.bf16.msra.mxu0 0
  %423 = vmatprep.subr.bf16.mxu0 0
  %424 = vmatpush1.bf16.msra.mxu0 0
  %425 = vmatprep.subr.bf16.mxu0 0
  %426 = vmatpush1.bf16.msra.mxu0 0
  %427 = vmatprep.subr.bf16.mxu0 0
  %428 = vmatpush1.bf16.msra.mxu0 0
  %429 = vmatprep.mubr.bf16.mxu0 0
  %430 = vmatmul.mubr.bf16.gmra.mrb[0].mxu0 %v341
  %v431 = vpop.f32.mrb[0].mxu0
  %v432 = vadd.f32 %v337, %v431
  %v433 = vpop.f32.mrb[0].mxu0
  %v434 = vadd.f32 %v337, %v433
  %v435 = vpop.f32.mrb[0].mxu0
  %v436 = vpop.f32.mrb[0].mxu0
  %437 = vdwg.mxu0
  %v438 = vmax.f32 %v391, 0.0
  %v439 = vmax.f32 %v393, 0.0
  %v440 = vmax.f32 %v432, 0.0
  %v441 = vmax.f32 %v434, 0.0
  %442 = vrot.lane.b32.xlu0 %v438, 17
  %v443 = vpop.permute.xlu0 %442
  %444 = vrot.lane.b32.xlu0 %v439, 17
  %v445 = vpop.permute.xlu0 %444
  %446 = vrot.lane.b32.xlu0 %v440, 17
  %v447 = vpop.permute.xlu0 %446
  %448 = vrot.lane.b32.xlu0 %v441, 17
  %v449 = vpop.permute.xlu0 %448
  %v450 = vsel %vm58, %v447, %v449
  %v451 = vsel %vm58, %v445, %v447
  %v452 = vsel %vm58, %v443, %v445
  %v453 = vsel %vm58, %v449, %v443
  %v454 = vmul.f32 %v453, %v66
  %v455 = vmul.f32 %v452, %v70
  %v456 = vmul.f32 %v451, %v74
  %v457 = vmul.f32 %v450, %v78
  %458 = vrot.lane.b32.xlu0 %v438, 16
  %v459 = vpop.permute.xlu0 %458
  %460 = vrot.lane.b32.xlu0 %v439, 16
  %v461 = vpop.permute.xlu0 %460
  %462 = vrot.lane.b32.xlu0 %v440, 16
  %v463 = vpop.permute.xlu0 %462
  %464 = vrot.lane.b32.xlu0 %v441, 16
  %v465 = vpop.permute.xlu0 %464
  %v466 = vsel %vm91, %v463, %v465
  %v467 = vsel %vm91, %v461, %v463
  %v468 = vsel %vm91, %v459, %v461
  %v469 = vsel %vm91, %v465, %v459
  %v470 = vmul.f32 %v469, %v99
  %v471 = vmul.f32 %v468, %v103
  %v472 = vmul.f32 %v467, %v107
  %v473 = vmul.f32 %v466, %v111
  %474 = vrot.lane.b32.xlu0 %v438, 15
  %v475 = vpop.permute.xlu0 %474
  %476 = vrot.lane.b32.xlu0 %v439, 15
  %v477 = vpop.permute.xlu0 %476
  %478 = vrot.lane.b32.xlu0 %v440, 15
  %v479 = vpop.permute.xlu0 %478
  %480 = vrot.lane.b32.xlu0 %v441, 15
  %v481 = vpop.permute.xlu0 %480
  %v482 = vsel %vm124, %v479, %v481
  %v483 = vsel %vm124, %v477, %v479
  %v484 = vsel %vm124, %v475, %v477
  %v485 = vsel %vm124, %v481, %v475
  %v486 = vmul.f32 %v485, %v132
  %v487 = vmul.f32 %v484, %v136
  %v488 = vmul.f32 %v483, %v140
  %v489 = vmul.f32 %v482, %v144
  %490 = vrot.lane.b32.xlu0 %v438, 1
  %v491 = vpop.permute.xlu0 %490
  %492 = vrot.lane.b32.xlu0 %v439, 1
  %v493 = vpop.permute.xlu0 %492
  %494 = vrot.lane.b32.xlu0 %v440, 1
  %v495 = vpop.permute.xlu0 %494
  %496 = vrot.lane.b32.xlu0 %v441, 1
  %v497 = vpop.permute.xlu0 %496
  %v498 = vsel %vm157, %v495, %v497
  %v499 = vsel %vm157, %v493, %v495
  %v500 = vsel %vm157, %v491, %v493
  %v501 = vsel %vm157, %v497, %v491
  %v502 = vmul.f32 %v501, %v165
  %v503 = vmul.f32 %v500, %v169
  %v504 = vmul.f32 %v499, %v173
  %v505 = vmul.f32 %v498, %v177
  %506 = vrot.lane.b32.xlu0 %v438, 127
  %v507 = vpop.permute.xlu0 %506
  %508 = vrot.lane.b32.xlu0 %v439, 127
  %v509 = vpop.permute.xlu0 %508
  %510 = vrot.lane.b32.xlu0 %v440, 127
  %v511 = vpop.permute.xlu0 %510
  %512 = vrot.lane.b32.xlu0 %v441, 127
  %v513 = vpop.permute.xlu0 %512
  %v514 = vsel %vm190, %v511, %v513
  %v515 = vsel %vm190, %v509, %v511
  %v516 = vsel %vm190, %v507, %v509
  %v517 = vsel %vm190, %v513, %v507
  %v518 = vmul.f32 %v516, %v198
  %v519 = vmul.f32 %v515, %v202
  %v520 = vmul.f32 %v514, %v206
  %v521 = vmul.f32 %v517, %v210
  %522 = vrot.lane.b32.xlu0 %v438, 113
  %v523 = vpop.permute.xlu0 %522
  %524 = vrot.lane.b32.xlu0 %v439, 113
  %v525 = vpop.permute.xlu0 %524
  %526 = vrot.lane.b32.xlu0 %v440, 113
  %v527 = vpop.permute.xlu0 %526
  %528 = vrot.lane.b32.xlu0 %v441, 113
  %v529 = vpop.permute.xlu0 %528
  %v530 = vsel %vm223, %v527, %v529
  %v531 = vsel %vm223, %v525, %v527
  %v532 = vsel %vm223, %v523, %v525
  %v533 = vsel %vm223, %v529, %v523
  %v534 = vmul.f32 %v532, %v231
  %v535 = vmul.f32 %v531, %v235
  %v536 = vmul.f32 %v530, %v239
  %v537 = vmul.f32 %v533, %v243
  %538 = vrot.lane.b32.xlu0 %v438, 112
  %v539 = vpop.permute.xlu0 %538
  %540 = vrot.lane.b32.xlu0 %v439, 112
  %v541 = vpop.permute.xlu0 %540
  %542 = vrot.lane.b32.xlu0 %v440, 112
  %v543 = vpop.permute.xlu0 %542
  %544 = vrot.lane.b32.xlu0 %v441, 112
  %v545 = vpop.permute.xlu0 %544
  %v546 = vsel %vm256, %v543, %v545
  %v547 = vsel %vm256, %v541, %v543
  %v548 = vsel %vm256, %v539, %v541
  %v549 = vsel %vm256, %v545, %v539
  %v550 = vmul.f32 %v548, %v264
  %v551 = vmul.f32 %v547, %v268
  %v552 = vmul.f32 %v546, %v272
  %v553 = vmul.f32 %v549, %v276
  %554 = vrot.lane.b32.xlu0 %v438, 111
  %v555 = vpop.permute.xlu0 %554
  %556 = vrot.lane.b32.xlu0 %v439, 111
  %v557 = vpop.permute.xlu0 %556
  %558 = vrot.lane.b32.xlu0 %v440, 111
  %v559 = vpop.permute.xlu0 %558
  %560 = vrot.lane.b32.xlu0 %v441, 111
  %v561 = vpop.permute.xlu0 %560
  %v562 = vsel %vm289, %v559, %v561
  %v563 = vsel %vm289, %v557, %v559
  %v564 = vsel %vm289, %v555, %v557
  %v565 = vsel %vm289, %v561, %v555
  %v566 = vmul.f32 %v564, %v297
  %v567 = vmul.f32 %v563, %v301
  %v568 = vmul.f32 %v562, %v305
  %v569 = vmul.f32 %v565, %v309
  %v570 = vpack.c.bf16 %v470, %v454
  %v571 = vpack.c.bf16 %v471, %v455
  %v572 = vpack.c.bf16 %v472, %v456
  %v573 = vpack.c.bf16 %v473, %v457
  %v574 = vpack.c.bf16 %v502, %v486
  %v575 = vpack.c.bf16 %v503, %v487
  %v576 = vpack.c.bf16 %v504, %v488
  %v577 = vpack.c.bf16 %v505, %v489
  %v578 = vpack.c.bf16 %v518, %v438
  %v579 = vpack.c.bf16 %v519, %v439
  %v580 = vpack.c.bf16 %v520, %v440
  %v581 = vpack.c.bf16 %v521, %v441
  %v582 = vpack.c.bf16 %v550, %v534
  %v583 = vpack.c.bf16 %v551, %v535
  %v584 = vpack.c.bf16 %v552, %v536
  %v585 = vpack.c.bf16 %v553, %v537
  %v586 = vpack.c.bf16 %v566, %v566
  %v587 = vpack.c.bf16 %v567, %v567
  %v588 = vpack.c.bf16 %v568, %v568
  %v589 = vpack.c.bf16 %v569, %v569
  %591 = vset.pattern.permute.xlu0 0
  %592 = vperm.xlu0 %591, %v41
  %v593 = vpop.permute.xlu0 %592
  %v596 = vsel %vm339, %v40, 0
  %v599 = vsel %vm343, %v586, 0
  %v602 = vsel %vm343, %v587, 0
  %v605 = vsel %vm343, %v588, 0
  %v608 = vsel %vm343, %v589, 0
  %610 = vmatprep.subr.bf16.mxu0 %v571
  %611 = vmatpush1.bf16.msra.mxu0 %v570
  %612 = vmatprep.subr.bf16.mxu0 %v575
  %613 = vmatpush1.bf16.msra.mxu0 %v574
  %614 = vmatprep.subr.bf16.mxu0 %v579
  %615 = vmatpush1.bf16.msra.mxu0 %v578
  %616 = vmatprep.subr.bf16.mxu0 %v583
  %617 = vmatpush1.bf16.msra.mxu0 %v582
  %618 = vmatprep.subr.bf16.mxu0 %v602
  %619 = vmatpush1.bf16.msra.mxu0 %v599
  %620 = vmatprep.subr.bf16.mxu0 0
  %621 = vmatpush1.bf16.msra.mxu0 0
  %622 = vmatprep.subr.bf16.mxu0 0
  %623 = vmatpush1.bf16.msra.mxu0 0
  %624 = vmatprep.subr.bf16.mxu0 0
  %625 = vmatpush1.bf16.msra.mxu0 0
  %626 = vmatprep.subr.bf16.mxu0 0
  %627 = vmatpush1.bf16.msra.mxu0 0
  %628 = vmatprep.subr.bf16.mxu0 0
  %629 = vmatpush1.bf16.msra.mxu0 0
  %630 = vmatprep.subr.bf16.mxu0 0
  %631 = vmatpush1.bf16.msra.mxu0 0
  %632 = vmatprep.subr.bf16.mxu0 0
  %633 = vmatpush1.bf16.msra.mxu0 0
  %634 = vmatprep.subr.bf16.mxu0 0
  %635 = vmatpush1.bf16.msra.mxu0 0
  %636 = vmatprep.subr.bf16.mxu0 0
  %637 = vmatpush1.bf16.msra.mxu0 0
  %638 = vmatprep.subr.bf16.mxu0 0
  %639 = vmatpush1.bf16.msra.mxu0 0
  %640 = vmatprep.subr.bf16.mxu0 0
  %641 = vmatpush1.bf16.msra.mxu0 0
  %642 = vmatprep.mubr.bf16.mxu0 0
  %643 = vmatmul.mubr.bf16.gmra.mrb[0].mxu0 %v596
  %v644 = vpop.f32.mrb[0].mxu0
  %v645 = vadd.f32 %v593, %v644
  %v646 = vpop.f32.mrb[0].mxu0
  %v647 = vadd.f32 %v593, %v646
  %v648 = vpop.f32.mrb[0].mxu0
  %v649 = vpop.f32.mrb[0].mxu0
  %650 = vdwg.mxu0
  %651 = vmatprep.subr.bf16.mxu0 %v573
  %652 = vmatpush1.bf16.msra.mxu0 %v572
  %653 = vmatprep.subr.bf16.mxu0 %v577
  %654 = vmatpush1.bf16.msra.mxu0 %v576
  %655 = vmatprep.subr.bf16.mxu0 %v581
  %656 = vmatpush1.bf16.msra.mxu0 %v580
  %657 = vmatprep.subr.bf16.mxu0 %v585
  %658 = vmatpush1.bf16.msra.mxu0 %v584
  %659 = vmatprep.subr.bf16.mxu0 %v608
  %660 = vmatpush1.bf16.msra.mxu0 %v605
  %661 = vmatprep.subr.bf16.mxu0 0
  %662 = vmatpush1.bf16.msra.mxu0 0
  %663 = vmatprep.subr.bf16.mxu0 0
  %664 = vmatpush1.bf16.msra.mxu0 0
  %665 = vmatprep.subr.bf16.mxu0 0
  %666 = vmatpush1.bf16.msra.mxu0 0
  %667 = vmatprep.subr.bf16.mxu0 0
  %668 = vmatpush1.bf16.msra.mxu0 0
  %669 = vmatprep.subr.bf16.mxu0 0
  %670 = vmatpush1.bf16.msra.mxu0 0
  %671 = vmatprep.subr.bf16.mxu0 0
  %672 = vmatpush1.bf16.msra.mxu0 0
  %673 = vmatprep.subr.bf16.mxu0 0
  %674 = vmatpush1.bf16.msra.mxu0 0
  %675 = vmatprep.subr.bf16.mxu0 0
  %676 = vmatpush1.bf16.msra.mxu0 0
  %677 = vmatprep.subr.bf16.mxu0 0
  %678 = vmatpush1.bf16.msra.mxu0 0
  %679 = vmatprep.subr.bf16.mxu0 0
  %680 = vmatpush1.bf16.msra.mxu0 0
  %681 = vmatprep.subr.bf16.mxu0 0
  %682 = vmatpush1.bf16.msra.mxu0 0
  %683 = vmatprep.mubr.bf16.mxu0 0
  %684 = vmatmul.mubr.bf16.gmra.mrb[0].mxu0 %v596
  %v685 = vpop.f32.mrb[0].mxu0
  %v686 = vadd.f32 %v593, %v685
  %v687 = vpop.f32.mrb[0].mxu0
  %v688 = vadd.f32 %v593, %v687
  %v689 = vpop.f32.mrb[0].mxu0
  %v690 = vpop.f32.mrb[0].mxu0
  %691 = vdwg.mxu0
  %v692 = vmax.f32 %v645, 0.0
  %v693 = vmax.f32 %v647, 0.0
  %v694 = vmax.f32 %v686, 0.0
  %v695 = vmax.f32 %v688, 0.0
  %v696 = vadd.f32 %v692, %v438
  %v697 = vadd.f32 %v693, %v439
  %v698 = vadd.f32 %v694, %v440
  %v699 = vadd.f32 %v695, %v441
  %700 = vrot.lane.b32.xlu0 %v696, 17
  %v701 = vpop.permute.xlu0 %700
  %702 = vrot.lane.b32.xlu0 %v697, 17
  %v703 = vpop.permute.xlu0 %702
  %704 = vrot.lane.b32.xlu0 %v698, 17
  %v705 = vpop.permute.xlu0 %704
  %706 = vrot.lane.b32.xlu0 %v699, 17
  %v707 = vpop.permute.xlu0 %706
  %v708 = vsel %vm58, %v705, %v707
  %v709 = vsel %vm58, %v703, %v705
  %v710 = vsel %vm58, %v701, %v703
  %v711 = vsel %vm58, %v707, %v701
  %v712 = vmul.f32 %v711, %v66
  %v713 = vmul.f32 %v710, %v70
  %v714 = vmul.f32 %v709, %v74
  %v715 = vmul.f32 %v708, %v78
  %716 = vrot.lane.b32.xlu0 %v696, 16
  %v717 = vpop.permute.xlu0 %716
  %718 = vrot.lane.b32.xlu0 %v697, 16
  %v719 = vpop.permute.xlu0 %718
  %720 = vrot.lane.b32.xlu0 %v698, 16
  %v721 = vpop.permute.xlu0 %720
  %722 = vrot.lane.b32.xlu0 %v699, 16
  %v723 = vpop.permute.xlu0 %722
  %v724 = vsel %vm91, %v721, %v723
  %v725 = vsel %vm91, %v719, %v721
  %v726 = vsel %vm91, %v717, %v719
  %v727 = vsel %vm91, %v723, %v717
  %v728 = vmul.f32 %v727, %v99
  %v729 = vmul.f32 %v726, %v103
  %v730 = vmul.f32 %v725, %v107
  %v731 = vmul.f32 %v724, %v111
  %732 = vrot.lane.b32.xlu0 %v696, 15
  %v733 = vpop.permute.xlu0 %732
  %734 = vrot.lane.b32.xlu0 %v697, 15
  %v735 = vpop.permute.xlu0 %734
  %736 = vrot.lane.b32.xlu0 %v698, 15
  %v737 = vpop.permute.xlu0 %736
  %738 = vrot.lane.b32.xlu0 %v699, 15
  %v739 = vpop.permute.xlu0 %738
  %v740 = vsel %vm124, %v737, %v739
  %v741 = vsel %vm124, %v735, %v737
  %v742 = vsel %vm124, %v733, %v735
  %v743 = vsel %vm124, %v739, %v733
  %v744 = vmul.f32 %v743, %v132
  %v745 = vmul.f32 %v742, %v136
  %v746 = vmul.f32 %v741, %v140
  %v747 = vmul.f32 %v740, %v144
  %748 = vrot.lane.b32.xlu0 %v696, 1
  %v749 = vpop.permute.xlu0 %748
  %750 = vrot.lane.b32.xlu0 %v697, 1
  %v751 = vpop.permute.xlu0 %750
  %752 = vrot.lane.b32.xlu0 %v698, 1
  %v753 = vpop.permute.xlu0 %752
  %754 = vrot.lane.b32.xlu0 %v699, 1
  %v755 = vpop.permute.xlu0 %754
  %v756 = vsel %vm157, %v753, %v755
  %v757 = vsel %vm157, %v751, %v753
  %v758 = vsel %vm157, %v749, %v751
  %v759 = vsel %vm157, %v755, %v749
  %v760 = vmul.f32 %v759, %v165
  %v761 = vmul.f32 %v758, %v169
  %v762 = vmul.f32 %v757, %v173
  %v763 = vmul.f32 %v756, %v177
  %764 = vrot.lane.b32.xlu0 %v696, 127
  %v765 = vpop.permute.xlu0 %764
  %766 = vrot.lane.b32.xlu0 %v697, 127
  %v767 = vpop.permute.xlu0 %766
  %768 = vrot.lane.b32.xlu0 %v698, 127
  %v769 = vpop.permute.xlu0 %768
  %770 = vrot.lane.b32.xlu0 %v699, 127
  %v771 = vpop.permute.xlu0 %770
  %v772 = vsel %vm190, %v769, %v771
  %v773 = vsel %vm190, %v767, %v769
  %v774 = vsel %vm190, %v765, %v767
  %v775 = vsel %vm190, %v771, %v765
  %v776 = vmul.f32 %v774, %v198
  %v777 = vmul.f32 %v773, %v202
  %v778 = vmul.f32 %v772, %v206
  %v779 = vmul.f32 %v775, %v210
  %780 = vrot.lane.b32.xlu0 %v696, 113
  %v781 = vpop.permute.xlu0 %780
  %782 = vrot.lane.b32.xlu0 %v697, 113
  %v783 = vpop.permute.xlu0 %782
  %784 = vrot.lane.b32.xlu0 %v698, 113
  %v785 = vpop.permute.xlu0 %784
  %786 = vrot.lane.b32.xlu0 %v699, 113
  %v787 = vpop.permute.xlu0 %786
  %v788 = vsel %vm223, %v785, %v787
  %v789 = vsel %vm223, %v783, %v785
  %v790 = vsel %vm223, %v781, %v783
  %v791 = vsel %vm223, %v787, %v781
  %v792 = vmul.f32 %v790, %v231
  %v793 = vmul.f32 %v789, %v235
  %v794 = vmul.f32 %v788, %v239
  %v795 = vmul.f32 %v791, %v243
  %796 = vrot.lane.b32.xlu0 %v696, 112
  %v797 = vpop.permute.xlu0 %796
  %798 = vrot.lane.b32.xlu0 %v697, 112
  %v799 = vpop.permute.xlu0 %798
  %800 = vrot.lane.b32.xlu0 %v698, 112
  %v801 = vpop.permute.xlu0 %800
  %802 = vrot.lane.b32.xlu0 %v699, 112
  %v803 = vpop.permute.xlu0 %802
  %v804 = vsel %vm256, %v801, %v803
  %v805 = vsel %vm256, %v799, %v801
  %v806 = vsel %vm256, %v797, %v799
  %v807 = vsel %vm256, %v803, %v797
  %v808 = vmul.f32 %v806, %v264
  %v809 = vmul.f32 %v805, %v268
  %v810 = vmul.f32 %v804, %v272
  %v811 = vmul.f32 %v807, %v276
  %812 = vrot.lane.b32.xlu0 %v696, 111
  %v813 = vpop.permute.xlu0 %812
  %814 = vrot.lane.b32.xlu0 %v697, 111
  %v815 = vpop.permute.xlu0 %814
  %816 = vrot.lane.b32.xlu0 %v698, 111
  %v817 = vpop.permute.xlu0 %816
  %818 = vrot.lane.b32.xlu0 %v699, 111
  %v819 = vpop.permute.xlu0 %818
  %v820 = vsel %vm289, %v817, %v819
  %v821 = vsel %vm289, %v815, %v817
  %v822 = vsel %vm289, %v813, %v815
  %v823 = vsel %vm289, %v819, %v813
  %v824 = vmul.f32 %v822, %v297
  %v825 = vmul.f32 %v821, %v301
  %v826 = vmul.f32 %v820, %v305
  %v827 = vmul.f32 %v823, %v309
  %v828 = vpack.c.bf16 %v728, %v712
  %v829 = vpack.c.bf16 %v729, %v713
  %v830 = vpack.c.bf16 %v730, %v714
  %v831 = vpack.c.bf16 %v731, %v715
  %v832 = vpack.c.bf16 %v760, %v744
  %v833 = vpack.c.bf16 %v761, %v745
  %v834 = vpack.c.bf16 %v762, %v746
  %v835 = vpack.c.bf16 %v763, %v747
  %v836 = vpack.c.bf16 %v776, %v696
  %v837 = vpack.c.bf16 %v777, %v697
  %v838 = vpack.c.bf16 %v778, %v698
  %v839 = vpack.c.bf16 %v779, %v699
  %v840 = vpack.c.bf16 %v808, %v792
  %v841 = vpack.c.bf16 %v809, %v793
  %v842 = vpack.c.bf16 %v810, %v794
  %v843 = vpack.c.bf16 %v811, %v795
  %v844 = vpack.c.bf16 %v824, %v824
  %v845 = vpack.c.bf16 %v825, %v825
  %v846 = vpack.c.bf16 %v826, %v826
  %v847 = vpack.c.bf16 %v827, %v827
  %849 = vset.pattern.permute.xlu0 0
  %850 = vperm.xlu0 %849, %v43
  %v851 = vpop.permute.xlu0 %850
  %v854 = vsel %vm339, %v42, 0
  %v857 = vsel %vm343, %v844, 0
  %v860 = vsel %vm343, %v845, 0
  %v863 = vsel %vm343, %v846, 0
  %v866 = vsel %vm343, %v847, 0
  %868 = vmatprep.subr.bf16.mxu0 %v829
  %869 = vmatpush1.bf16.msra.mxu0 %v828
  %870 = vmatprep.subr.bf16.mxu0 %v833
  %871 = vmatpush1.bf16.msra.mxu0 %v832
  %872 = vmatprep.subr.bf16.mxu0 %v837
  %873 = vmatpush1.bf16.msra.mxu0 %v836
  %874 = vmatprep.subr.bf16.mxu0 %v841
  %875 = vmatpush1.bf16.msra.mxu0 %v840
  %876 = vmatprep.subr.bf16.mxu0 %v860
  %877 = vmatpush1.bf16.msra.mxu0 %v857
  %878 = vmatprep.subr.bf16.mxu0 0
  %879 = vmatpush1.bf16.msra.mxu0 0
  %880 = vmatprep.subr.bf16.mxu0 0
  %881 = vmatpush1.bf16.msra.mxu0 0
  %882 = vmatprep.subr.bf16.mxu0 0
  %883 = vmatpush1.bf16.msra.mxu0 0
  %884 = vmatprep.subr.bf16.mxu0 0
  %885 = vmatpush1.bf16.msra.mxu0 0
  %886 = vmatprep.subr.bf16.mxu0 0
  %887 = vmatpush1.bf16.msra.mxu0 0
  %888 = vmatprep.subr.bf16.mxu0 0
  %889 = vmatpush1.bf16.msra.mxu0 0
  %890 = vmatprep.subr.bf16.mxu0 0
  %891 = vmatpush1.bf16.msra.mxu0 0
  %892 = vmatprep.subr.bf16.mxu0 0
  %893 = vmatpush1.bf16.msra.mxu0 0
  %894 = vmatprep.subr.bf16.mxu0 0
  %895 = vmatpush1.bf16.msra.mxu0 0
  %896 = vmatprep.subr.bf16.mxu0 0
  %897 = vmatpush1.bf16.msra.mxu0 0
  %898 = vmatprep.subr.bf16.mxu0 0
  %899 = vmatpush1.bf16.msra.mxu0 0
  %900 = vmatprep.mubr.bf16.mxu0 0
  %901 = vmatmul.mubr.bf16.gmra.mrb[0].mxu0 %v854
  %v902 = vpop.f32.mrb[0].mxu0
  %v903 = vadd.f32 %v851, %v902
  %v904 = vpop.f32.mrb[0].mxu0
  %v905 = vadd.f32 %v851, %v904
  %v906 = vpop.f32.mrb[0].mxu0
  %v907 = vpop.f32.mrb[0].mxu0
  %908 = vdwg.mxu0
  %909 = vmatprep.subr.bf16.mxu0 %v831
  %910 = vmatpush1.bf16.msra.mxu0 %v830
  %911 = vmatprep.subr.bf16.mxu0 %v835
  %912 = vmatpush1.bf16.msra.mxu0 %v834
  %913 = vmatprep.subr.bf16.mxu0 %v839
  %914 = vmatpush1.bf16.msra.mxu0 %v838
  %915 = vmatprep.subr.bf16.mxu0 %v843
  %916 = vmatpush1.bf16.msra.mxu0 %v842
  %917 = vmatprep.subr.bf16.mxu0 %v866
  %918 = vmatpush1.bf16.msra.mxu0 %v863
  %919 = vmatprep.subr.bf16.mxu0 0
  %920 = vmatpush1.bf16.msra.mxu0 0
  %921 = vmatprep.subr.bf16.mxu0 0
  %922 = vmatpush1.bf16.msra.mxu0 0
  %923 = vmatprep.subr.bf16.mxu0 0
  %924 = vmatpush1.bf16.msra.mxu0 0
  %925 = vmatprep.subr.bf16.mxu0 0
  %926 = vmatpush1.bf16.msra.mxu0 0
  %927 = vmatprep.subr.bf16.mxu0 0
  %928 = vmatpush1.bf16.msra.mxu0 0
  %929 = vmatprep.subr.bf16.mxu0 0
  %930 = vmatpush1.bf16.msra.mxu0 0
  %931 = vmatprep.subr.bf16.mxu0 0
  %932 = vmatpush1.bf16.msra.mxu0 0
  %933 = vmatprep.subr.bf16.mxu0 0
  %934 = vmatpush1.bf16.msra.mxu0 0
  %935 = vmatprep.subr.bf16.mxu0 0
  %936 = vmatpush1.bf16.msra.mxu0 0
  %937 = vmatprep.subr.bf16.mxu0 0
  %938 = vmatpush1.bf16.msra.mxu0 0
  %939 = vmatprep.subr.bf16.mxu0 0
  %940 = vmatpush1.bf16.msra.mxu0 0
  %941 = vmatprep.mubr.bf16.mxu0 0
  %942 = vmatmul.mubr.bf16.gmra.mrb[0].mxu0 %v854
  %v943 = vpop.f32.mrb[0].mxu0
  %v944 = vadd.f32 %v851, %v943
  %v945 = vpop.f32.mrb[0].mxu0
  %v946 = vadd.f32 %v851, %v945
  %v947 = vpop.f32.mrb[0].mxu0
  %v948 = vpop.f32.mrb[0].mxu0
  %949 = vdwg.mxu0
  %950 = vst [vmem:[%s8] sm:$0xff] %v903
  %951 = vst [vmem:[%s8 + $0x8] sm:$0xff] %v905
  %952 = vst [vmem:[%s8 + $0x10] sm:$0xff] %v944
  %953 = vst [vmem:[%s8 + $0x18] sm:$0xff] %v946
  // Predicated region
  $region34: #{forward.1} parent=0 // pred_check
    _
  $region35: #{forward.1} parent=0 // pred_check_branch
    %955 = sbr.rel (0) target = $region37
  $region36: #{forward.1} parent=0 // pred_region
    _
  $region37: #{forward.1} parent=0 // pred_fallthru
    _
  // Predicated region
  $region38: #{forward.1} parent=0 // pred_check
    _
  $region39: #{forward.1} parent=0 // pred_check_branch
    %957 = sbr.rel (0) target = $region41
  $region40: #{forward.1} parent=0 // pred_region
    _
  $region41: #{forward.1} parent=0 // pred_fallthru
    _

</llo_original>
